<compile_context>
chip_gen: v5e
topology: v5e:2x2
jax: 0.10.0
libtpu: 0.0.40
codegen_flags: <defaults>
</compile_context>

<pallas_src>
import math

import jax
import jax.numpy as jnp
from jax.experimental import pallas as pl
from jax.experimental.pallas import tpu as pltpu


# ------------------------------- kernels ------------------------------------

def feat_transform_kernel(h_ref, w_ref, dinv_ref, xw_ref):
    """xw = dinv_rows * (h @ W), emitted in bf16 for the aggregation matmul."""
    xw = jnp.dot(
        h_ref[...].astype(jnp.bfloat16),
        w_ref[...].astype(jnp.bfloat16),
        preferred_element_type=jnp.float32,
    )
    xw_ref[...] = (dinv_ref[...] * xw).astype(xw_ref.dtype)


def aggregate_kernel(a_ref, xw_ref, dinv_ref, b_ref, skip_ref, out_ref, acc_ref):
    """acc += A_tile @ xw_tile ; finalize: max(ReLU(dinv*acc + b), skip)."""
    k = pl.program_id(1)

    @pl.when(k == 0)
    def _init():
        acc_ref[...] = jnp.zeros_like(acc_ref)

    acc_ref[...] += jnp.dot(
        a_ref[...], xw_ref[...], preferred_element_type=jnp.float32
    )

    @pl.when(k == pl.num_programs(1) - 1)
    def _finalize():
        h = dinv_ref[...] * acc_ref[...] + b_ref[...]
        out_ref[...] = jnp.maximum(jnp.maximum(h, 0.0), skip_ref[...]).astype(
            out_ref.dtype
        )


# ------------------------------ layer wrapper --------------------------------

def _gcn_relu_layer(a_bf16, dinv_col, h_in, w_pad, b_pad, skip, *, tm, tk):
    """out = max(ReLU(D^-1/2 (A+I) D^-1/2 h W + b), skip)  (skip=0 -> plain ReLU)."""
    n_pad = a_bf16.shape[0]
    fin = h_in.shape[1]
    hp = w_pad.shape[1]

    # --- feature transform: XW' = dinv * (h @ W), bf16 output ----------------
    xw = pl.pallas_call(
        feat_transform_kernel,
        out_shape=jax.ShapeDtypeStruct((n_pad, hp), jnp.bfloat16),
        grid=(n_pad // tm,),
        in_specs=[
            pl.BlockSpec((tm, fin), lambda i: (i, 0)),
            pl.BlockSpec((fin, hp), lambda i: (0, 0)),
            pl.BlockSpec((tm, 1), lambda i: (i, 0)),
        ],
        out_specs=pl.BlockSpec((tm, hp), lambda i: (i, 0)),
        compiler_params=pltpu.CompilerParams(
            dimension_semantics=("parallel",),
            vmem_limit_bytes=32 * 1024 * 1024,
        ),
        cost_estimate=pl.CostEstimate(
            flops=2 * n_pad * fin * hp,
            transcendentals=0,
            bytes_accessed=n_pad * fin * 4 + fin * hp * 4 + n_pad * hp * 2 + n_pad * 4,
        ),
    )(h_in, w_pad, dinv_col)

    # --- aggregation: out = max(ReLU(dinv * ((A+I) @ XW') + b), skip) --------
    out = pl.pallas_call(
        aggregate_kernel,
        out_shape=jax.ShapeDtypeStruct((n_pad, hp), jnp.float32),
        grid_spec=pltpu.PrefetchScalarGridSpec(
            num_scalar_prefetch=0,
            grid=(n_pad // tm, n_pad // tk),
            in_specs=[
                pl.BlockSpec((tm, tk), lambda i, k: (i, k)),   # (A+I) tile, bf16
                pl.BlockSpec((tk, hp), lambda i, k: (k, 0)),   # XW' tile,  bf16
                pl.BlockSpec((tm, 1), lambda i, k: (i, 0)),    # dinv rows, f32
                pl.BlockSpec((1, hp), lambda i, k: (0, 0)),    # bias
                pl.BlockSpec((tm, hp), lambda i, k: (i, 0)),   # JK-max skip input
            ],
            out_specs=pl.BlockSpec((tm, hp), lambda i, k: (i, 0)),
            scratch_shapes=[pltpu.VMEM((tm, hp), jnp.float32)],
        ),
        compiler_params=pltpu.CompilerParams(
            dimension_semantics=("parallel", "arbitrary"),
            vmem_limit_bytes=32 * 1024 * 1024,
        ),
        cost_estimate=pl.CostEstimate(
            flops=2 * n_pad * n_pad * hp,
            transcendentals=0,
            bytes_accessed=n_pad * n_pad * 2
            + (n_pad // tm) * n_pad * hp * 2
            + 2 * n_pad * hp * 4,
        ),
    )(a_bf16, xw, dinv_col, b_pad, skip)
    return out


# ------------------------------ full forward ---------------------------------

def spectral_normalize(w, n_iter=30):
    """Fold torch spectral_norm: divide W by its largest singular value (plain JAX glue)."""
    u = jnp.ones((w.shape[0],), jnp.float32) / jnp.sqrt(jnp.float32(w.shape[0]))

    def body(_, u):
        v = w.T @ u
        v = v / (jnp.linalg.norm(v) + 1e-12)
        u2 = w @ v
        return u2 / (jnp.linalg.norm(u2) + 1e-12)

    u = jax.lax.fori_loop(0, n_iter, body, u)
    sigma = jnp.linalg.norm(w.T @ u)
    return w / (sigma + 1e-12)


def jk_forward(x, edge_index, w1, b1, w2, b2, *, tm=128, tk=128):
    """JK forward: max(ReLU(GCN1(x)), ReLU(GCN2(ReLU(GCN1(x)))))."""
    n, f_in = x.shape
    hidden = w1.shape[1]

    # Lane-dense hidden width (multiple of 128); zero-pad weights / biases.
    hp = ((hidden + 127) // 128) * 128
    w1p = jnp.pad(w1.astype(jnp.float32), ((0, 0), (0, hp - hidden)))
    w2p = jnp.pad(w2.astype(jnp.float32), ((0, hp - hidden), (0, hp - hidden)))
    b1p = jnp.pad(b1.astype(jnp.float32).reshape(1, -1), ((0, 0), (0, hp - hidden)))
    b2p = jnp.pad(b2.astype(jnp.float32).reshape(1, -1), ((0, 0), (0, hp - hidden)))

    # Pad node count to a multiple of both tile sizes (padded rows are inert).
    step = math.lcm(tm, tk)
    n_pad = ((n + step - 1) // step) * step
    x_pad = jnp.pad(x.astype(jnp.float32), ((0, n_pad - n), (0, 0)))

    # Glue: raw (A + I) adjacency (src->dst, edge multiplicity kept) and D^{-1/2}.
    # Normalization is applied inside the kernels on the skinny (tile, Hp)
    # tensors, so only this single dense N x N array (in bf16) is materialized.
    src, dst = edge_index[0], edge_index[1]
    a = jnp.zeros((n_pad, n_pad), jnp.float32).at[dst, src].add(1.0)
    a = a + jnp.eye(n_pad, dtype=jnp.float32)
    deg = jnp.sum(a, axis=1)
    dinv = jnp.where(deg > 0, jax.lax.rsqrt(deg), 0.0)
    a_bf16 = a.astype(jnp.bfloat16)            # small-integer entries: exact in bf16
    dinv_col = dinv.reshape(n_pad, 1).astype(jnp.float32)

    # TODO(synk): for realistic sparse graphs, replace the dense (A+I) with a
    # block-sparse / CSR formulation driven by PrefetchScalarGridSpec.

    zeros_skip = jnp.zeros((n_pad, hp), jnp.float32)
    h1 = _gcn_relu_layer(a_bf16, dinv_col, x_pad, w1p, b1p, zeros_skip, tm=tm, tk=tk)
    # Second GCN layer; JumpingKnowledge(max) fused into the finalize via skip=h1.
    out = _gcn_relu_layer(a_bf16, dinv_col, h1, w2p, b2p, h1, tm=tm, tk=tk)
    return out[:n, :hidden]


# ---------------------------------- demo --------------------------------------

if __name__ == "__main__":
    N, F_IN, HIDDEN, E = 200, 16, 32, 800
    TM = TK = 128                     # N pads to 256 -> grid (2, 2)

    key = jax.random.PRNGKey(0)
    kx, ke1, ke2, kw1, kw2 = jax.random.split(key, 5)

    x = jax.random.normal(kx, (N, F_IN), dtype=jnp.float32)
    edge_index = jnp.stack(
        [
            jax.random.randint(ke1, (E,), 0, N, dtype=jnp.int32),
            jax.random.randint(ke2, (E,), 0, N, dtype=jnp.int32),
        ],
        axis=0,
    )

    # Glorot-ish init + folded spectral norm; GCNConv bias defaults to zeros.
    w1 = jax.random.normal(kw1, (F_IN, HIDDEN), jnp.float32) * jnp.sqrt(2.0 / (F_IN + HIDDEN))
    w2 = jax.random.normal(kw2, (HIDDEN, HIDDEN), jnp.float32) * jnp.sqrt(1.0 / HIDDEN)
    w1 = spectral_normalize(w1)
    w2 = spectral_normalize(w2)
    b1 = jnp.zeros((HIDDEN,), jnp.float32)
    b2 = jnp.zeros((HIDDEN,), jnp.float32)

    out = jk_forward(x, edge_index, w1, b1, w2, b2, tm=TM, tk=TK)
    jax.block_until_ready(out)

    # ---- pure-JAX reference (mirrors the kernel's bf16 MXU operand casts) ----
    src, dst = edge_index[0], edge_index[1]
    a = jnp.zeros((N, N), jnp.float32).at[dst, src].add(1.0) + jnp.eye(N)
    deg = a.sum(axis=1)
    dinv = jnp.where(deg > 0, jax.lax.rsqrt(deg), 0.0)
    a_bf = a.astype(jnp.bfloat16)

    def ref_layer(h, w, b):
        xw = jnp.dot(h.astype(jnp.bfloat16), w.astype(jnp.bfloat16),
                     preferred_element_type=jnp.float32)
        xw = (dinv[:, None] * xw).astype(jnp.bfloat16)
        agg = jnp.dot(a_bf, xw, preferred_element_type=jnp.float32)
        return jnp.maximum(dinv[:, None] * agg + b[None, :], 0.0)

    h1_ref = ref_layer(x, w1, b1)
    h2_ref = ref_layer(h1_ref, w2, b2)
    ref = jnp.maximum(h1_ref, h2_ref)

    assert out.shape == (N, HIDDEN)
    max_err = float(jnp.max(jnp.abs(out - ref)))
    assert jnp.allclose(out, ref, atol=1e-2, rtol=1e-2), max_err

    print("KERNEL_OK")
</pallas_src>

<mosaic_0001>
module attributes {stable_mosaic.version = 11 : i64} {
  func.func @feat_transform_kernel(%arg0: i32, %arg1: memref<128x16xf32, #tpu.memory_space<vmem>>, %arg2: memref<16x128xf32, #tpu.memory_space<vmem>>, %arg3: memref<128x1xf32, #tpu.memory_space<vmem>>, %arg4: memref<128x128xbf16, #tpu.memory_space<vmem>>) attributes {dimension_semantics = [#tpu.dimension_semantics<parallel>], iteration_bounds = array<i64: 2>, scalar_prefetch = 0 : i64, scratch_operands = 0 : i64, tpu.core_type = #tpu.core_type<tc>, window_params = [{transform_indices = @transform_0, window_bounds = array<i64: 128, 16>}, {pipeline_mode = #tpu.pipeline_mode<synchronous>, transform_indices = @transform_1, window_bounds = array<i64: 16, 128>}, {transform_indices = @transform_2, window_bounds = array<i64: 128, 1>}, {transform_indices = @transform_3, window_bounds = array<i64: 128, 128>}]} {
    %c0 = arith.constant 0 : index
    %c0_0 = arith.constant 0 : index
    %0 = vector.load %arg1[%c0, %c0_0] : memref<128x16xf32, #tpu.memory_space<vmem>>, vector<128x16xf32>
    %1 = arith.truncf %0 : vector<128x16xf32> to vector<128x16xbf16>
    %c0_1 = arith.constant 0 : index
    %c0_2 = arith.constant 0 : index
    %2 = vector.load %arg2[%c0_1, %c0_2] : memref<16x128xf32, #tpu.memory_space<vmem>>, vector<16x128xf32>
    %3 = arith.truncf %2 : vector<16x128xf32> to vector<16x128xbf16>
    %cst = arith.constant dense<0.000000e+00> : vector<128x128xf32>
    %4 = tpu.matmul %1, %3, %cst {dimension_numbers = #tpu.dot_dimension_numbers<[1], [0], [0], [1], [0, 0, 1, 1], [], []>} : vector<128x16xbf16>, vector<16x128xbf16>, vector<128x128xf32> -> vector<128x128xf32>
    %c0_3 = arith.constant 0 : index
    %c0_4 = arith.constant 0 : index
    %5 = vector.load %arg3[%c0_3, %c0_4] : memref<128x1xf32, #tpu.memory_space<vmem>>, vector<128x1xf32>
    %6 = vector.broadcast %5 : vector<128x1xf32> to vector<128x128xf32>
    %7 = arith.mulf %6, %4 : vector<128x128xf32>
    %8 = arith.truncf %7 : vector<128x128xf32> to vector<128x128xbf16>
    %c0_5 = arith.constant 0 : index
    %c0_6 = arith.constant 0 : index
    %9 = vector.load %arg4[%c0_5, %c0_6] : memref<128x128xbf16, #tpu.memory_space<vmem>>, vector<128x128xbf16>
    tpu.vector_store %arg4[%c0_5, %c0_6], %8 {strides = array<i32>} : memref<128x128xbf16, #tpu.memory_space<vmem>>, vector<128x128xbf16>,
    return
  }
  func.func @transform_0(%arg0: i32) -> (i32, i32) {
    %c0_i32 = arith.constant 0 : i32
    %c0_i32_0 = arith.constant 0 : i32
    return %arg0, %c0_i32 : i32, i32
  }
  func.func @transform_1(%arg0: i32) -> (i32, i32) {
    %c0_i32 = arith.constant 0 : i32
    %c0_i32_0 = arith.constant 0 : i32
    %c0_i32_1 = arith.constant 0 : i32
    return %c0_i32, %c0_i32_0 : i32, i32
  }
  func.func @transform_2(%arg0: i32) -> (i32, i32) {
    %c0_i32 = arith.constant 0 : i32
    %c0_i32_0 = arith.constant 0 : i32
    return %arg0, %c0_i32 : i32, i32
  }
  func.func @transform_3(%arg0: i32) -> (i32, i32) {
    %c0_i32 = arith.constant 0 : i32
    %c0_i32_0 = arith.constant 0 : i32
    return %arg0, %c0_i32 : i32, i32
  }
}

</mosaic_0001>

<llo_original>
// kernel: tpu_custom_call.1
$region0: #{tpu_custom_call.1}
  #allocation0 [shape = 'u32[]', space=smem, size = 0x4, offset = 0x4, fixed_abs, tag = 'smem constant byte address 0x4 - core index']
  #allocation1 [shape = 'u32[72,128]{1,0:T(1,128)}', space=vmem, size = 0x9000, scoped, tag = 'internal scratch']
  %s0 = inlined_call_operand.vmem [shape: f32[256,16], index: 0, kind: input, shape index: {}]
  %s1 = inlined_call_operand.vmem [shape: f32[16,128], index: 1, kind: input, shape index: {}]
  %s2 = inlined_call_operand.vmem [shape: f32[256,1], index: 2, kind: input, shape index: {}]
  %s3 = inlined_call_operand.hbm [shape: bf16[256,128], index: 3, kind: output, shape index: {}]
  %s4 = sld [smem:[#allocation0]]
  $region45: #{tpu_custom_call.1} parent=0
    _
  %s6 = ssub.s32 1, %s4
  %s7 = scalar_select 0, %s6, %s4
  $region1: #{tpu_custom_call.1} parent=0
    #allocation2 [shape = 'u8[65536]{0}', space=vmem, size = 0x10000, scoped, tag = 'output window, operand 0']
    #allocation3 [shape = 's32[2]{0}', space=sflag, size = 0x8, scoped, tag = 'scoped memory for tpu_custom_call.1']
    %8 = vsyncpa [#allocation3], 0
    %s9 = scalar_lea.sflag [#allocation3], 1
    %10 = vsyncpa %s9, 0
    loop: start=0, step=1, limit=4
    $region2: #{tpu_custom_call.1} parent=1 // loop_pre_header
      _
    $region3: #{tpu_custom_call.1} parent=1 // loop_header
      %s12 = sphi 0, %s16
      %p13 = scmp.ge.s32.totalorder %s12, 4
      %s22 = sphi 0, %s24
      %s25 = sphi 0, %s22
      %s26 = sphi 0, %s25
      %s42 = sphi 0, %s26
      %s46 = sphi 0, %s46
      %s48 = sphi 0, %s46
      %s49 = sphi 0, %s48
      %s63 = sphi 0, %s49
      %s69 = sphi 0, %s71
      %s72 = sphi 0, %s69
      %s73 = sphi 0, %s72
      %s89 = sphi 0, %s73
      %s95 = sphi 0, %s97
      %s98 = sphi 0, %s95
      %s99 = sphi 0, %s98
      %s115 = sphi 0, %s99
    $region4: #{tpu_custom_call.1} parent=1 // loop_header_branch
      %15 = sbr.rel (%p13) target = $region8
    $region5: #{tpu_custom_call.1} parent=1 // loop_body
      %s17 = ssub.s32 %s12, 1
      %s18 = ssub.s32 %s12, 2
      %s19 = sadd.s32 %s12, 1
      %s20 = ssub.s32 %s12, %s19
      %p21 = scmp.eq.s32.totalorder %s20, 0
      %s23 = sadd.s32 %s22, 1
      %s24 = scalar_select %p21, %s22, %s23
      %p27 = pneg %p21
      %p28 = scmp.eq.s32.totalorder %s12, 1
      %p29 = por %p27, %p28
      %p30 = scmp.ne.s32.totalorder %s22, %s25
      %p31 = scmp.eq.s32.totalorder %s12, 0
      %p32 = por %p30, %p31
      %p33 = scmp.ne.s32.totalorder %s22, %s25
      %p34 = scmp.eq.s32.totalorder %s17, 1
      %p35 = por %p33, %p34
      %p36 = scmp.ne.s32.totalorder %s25, %s26
      %p37 = scmp.eq.s32.totalorder %s17, 0
      %p38 = por %p36, %p37
      %p39 = scmp.ne.s32.totalorder %s25, %s26
      %p40 = scmp.eq.s32.totalorder %s18, 1
      %p41 = por %p39, %p40
      %p43 = scmp.ne.s32.totalorder %s26, %s42
      %p44 = scmp.eq.s32.totalorder %s18, 0
      %p45 = por %p43, %p44
      %s47 = sadd.s32 %s46, 1
      %p50 = scmp.eq.s32.totalorder %s12, 1
      %p51 = scmp.ne.s32.totalorder %s46, %s48
      %p52 = scmp.eq.s32.totalorder %s12, 0
      %p53 = por %p51, %p52
      %p54 = scmp.ne.s32.totalorder %s46, %s48
      %p55 = scmp.eq.s32.totalorder %s17, 1
      %p56 = por %p54, %p55
      %p57 = scmp.ne.s32.totalorder %s48, %s49
      %p58 = scmp.eq.s32.totalorder %s17, 0
      %p59 = por %p57, %p58
      %p60 = scmp.ne.s32.totalorder %s48, %s49
      %p61 = scmp.eq.s32.totalorder %s18, 1
      %p62 = por %p60, %p61
      %p64 = scmp.ne.s32.totalorder %s49, %s63
      %p65 = scmp.eq.s32.totalorder %s18, 0
      %p66 = por %p64, %p65
      %s67 = ssub.s32 %s12, %s19
      %p68 = scmp.eq.s32.totalorder %s67, 0
      %s70 = sadd.s32 %s69, 1
      %s71 = scalar_select %p68, %s69, %s70
      %p74 = pneg %p68
      %p75 = scmp.eq.s32.totalorder %s12, 1
      %p76 = por %p74, %p75
      %p77 = scmp.ne.s32.totalorder %s69, %s72
      %p78 = scmp.eq.s32.totalorder %s12, 0
      %p79 = por %p77, %p78
      %p80 = scmp.ne.s32.totalorder %s69, %s72
      %p81 = scmp.eq.s32.totalorder %s17, 1
      %p82 = por %p80, %p81
      %p83 = scmp.ne.s32.totalorder %s72, %s73
      %p84 = scmp.eq.s32.totalorder %s17, 0
      %p85 = por %p83, %p84
      %p86 = scmp.ne.s32.totalorder %s72, %s73
      %p87 = scmp.eq.s32.totalorder %s18, 1
      %p88 = por %p86, %p87
      %p90 = scmp.ne.s32.totalorder %s73, %s89
      %p91 = scmp.eq.s32.totalorder %s18, 0
      %p92 = por %p90, %p91
      %s93 = ssub.s32 %s12, %s19
      %p94 = scmp.eq.s32.totalorder %s93, 0
      %s96 = sadd.s32 %s95, 1
      %s97 = scalar_select %p94, %s95, %s96
      %p100 = pneg %p94
      %p101 = scmp.eq.s32.totalorder %s12, 1
      %p102 = por %p100, %p101
      %p103 = scmp.ne.s32.totalorder %s95, %s98
      %p104 = scmp.eq.s32.totalorder %s12, 0
      %p105 = por %p103, %p104
      %p106 = scmp.ne.s32.totalorder %s95, %s98
      %p107 = scmp.eq.s32.totalorder %s17, 1
      %p108 = por %p106, %p107
      %p109 = scmp.ne.s32.totalorder %s98, %s99
      %p110 = scmp.eq.s32.totalorder %s17, 0
      %p111 = por %p109, %p110
      %p112 = scmp.ne.s32.totalorder %s98, %s99
      %p113 = scmp.eq.s32.totalorder %s18, 1
      %p114 = por %p112, %p113
      %p116 = scmp.ne.s32.totalorder %s99, %s115
      %p117 = scmp.eq.s32.totalorder %s18, 0
      %p118 = por %p116, %p117
      %p119 = scmp.le.s32.totalorder 1, %s12
      %p120 = scmp.lt.s32.totalorder %s12, 3
      %p121 = pnand %p119, %p120
      %p122 = pneg %p121
      // Predicated region
      $region9: #{tpu_custom_call.1} parent=5 // pred_check
        _
      $region10: #{tpu_custom_call.1} parent=5 // pred_check_branch
        %124 = sbr.rel (%p121) target = $region12
      $region11: #{tpu_custom_call.1} parent=5 // pred_region
        %s125 = ssub.s32 %s12, 1
        // Predicated region
        $region13: #{tpu_custom_call.1} parent=11 // pred_check
          %p126 = pneg %p59
        $region14: #{tpu_custom_call.1} parent=11 // pred_check_branch
          %128 = sbr.rel (%p126) target = $region16
        $region15: #{tpu_custom_call.1} parent=11 // pred_region
          _
        $region16: #{tpu_custom_call.1} parent=11 // pred_fallthru
          _
      $region12: #{tpu_custom_call.1} parent=5 // pred_fallthru
        _
      %p129 = scmp.lt.s32.totalorder %s12, 2
      // Predicated region
      $region17: #{tpu_custom_call.1} parent=5 // pred_check
        %p130 = pneg %p129
      $region18: #{tpu_custom_call.1} parent=5 // pred_check_branch
        %132 = sbr.rel (%p130) target = $region20
      $region19: #{tpu_custom_call.1} parent=5 // pred_region
        // Predicated region
        $region21: #{tpu_custom_call.1} parent=19 // pred_check
          %p133 = pneg %p32
        $region22: #{tpu_custom_call.1} parent=19 // pred_check_branch
          %135 = sbr.rel (%p133) target = $region24
        $region23: #{tpu_custom_call.1} parent=19 // pred_region
          %s136 = smul.u32 16, %s12
          %p137 = scmp.lt.s32.totalorder %s136, 31
          %s138 = scalar_select %p137, %s136, 31
          %s139 = smul.addr %s138, 8
          %s140 = scalar_lea.vmem %s0, %s139
          %s141 = smul.u32 16, %s12
        $region24: #{tpu_custom_call.1} parent=19 // pred_fallthru
          _
        // Predicated region
        $region25: #{tpu_custom_call.1} parent=19 // pred_check
          %p142 = pneg %p79
        $region26: #{tpu_custom_call.1} parent=19 // pred_check_branch
          %144 = sbr.rel (%p142) target = $region28
        $region27: #{tpu_custom_call.1} parent=19 // pred_region
          %s145 = smul.u32 16, %s12
          %p146 = scmp.lt.s32.totalorder %s145, 31
          %s147 = scalar_select %p146, %s145, 31
          %s148 = smul.addr %s147, 8
          %s149 = scalar_lea.vmem %s2, %s148
          %s150 = smul.u32 16, %s12
        $region28: #{tpu_custom_call.1} parent=19 // pred_fallthru
          _
      $region20: #{tpu_custom_call.1} parent=5 // pred_fallthru
        _
      %p151 = scmp.le.s32.totalorder 1, %s12
      %p152 = scmp.lt.s32.totalorder %s12, 3
      %p153 = pnand %p151, %p152
      %p154 = pneg %p153
      // Predicated region
      $region29: #{tpu_custom_call.1} parent=5 // pred_check
        _
      $region30: #{tpu_custom_call.1} parent=5 // pred_check_branch
        %156 = sbr.rel (%p153) target = $region32
      $region31: #{tpu_custom_call.1} parent=5 // pred_region
        %s157 = ssub.s32 %s12, 1
        %s158 = smul.u32 16, %s17
        %p159 = scmp.lt.s32.totalorder %s158, 31
        %s160 = scalar_select %p159, %s158, 31
        %s161 = smul.addr %s160, 8
        %s162 = scalar_lea.vmem %s0, %s161
        %p163 = pneg %p38
        %p164 = pneg %p35
        %p165 = pneg %p59
        %p166 = pneg %p56
        %s167 = smul.u32 16, %s17
        %p168 = scmp.lt.s32.totalorder %s167, 31
        %s169 = scalar_select %p168, %s167, 31
        %s170 = smul.addr %s169, 8
        %s171 = scalar_lea.vmem %s2, %s170
        %p172 = pneg %p85
        %p173 = pneg %p82
        %p174 = pneg %p111
        %p175 = pneg %p108
        %s176 = sand.u32 %s98, 1
        %s177 = scalar_lea.sflag [#allocation3], %s176
        %s178 = sand.u32 %s98, 1
        %s179 = smul.addr %s178, 64
        %s180 = scalar_lea.vmem [#allocation2], %s179
        %s181 = smul.u32 16, %s17
        %p182 = scmp.lt.s32.totalorder %s181, 31
        %s183 = scalar_select %p182, %s181, 31
        %s184 = smul.addr %s183, 8
        %s185 = scalar_lea.vmem %s0, %s184
        %s186 = smul.u32 16, %s17
        %s187 = smul.u32 16, %s17
        %p188 = scmp.lt.s32.totalorder %s187, 31
        %s189 = scalar_select %p188, %s187, 31
        %s190 = smul.addr %s189, 8
        %s191 = scalar_lea.vmem %s2, %s190
        %s192 = smul.u32 16, %s17
        %s193 = smul.u32 16, %s17
        %v195 = vld [vmem:[%s185] sm:$0xff]
        %v196 = vld [vmem:[%s185 + $0x8] sm:$0xff]
        %v197 = vld [vmem:[%s185 + $0x10] sm:$0xff]
        %v198 = vld [vmem:[%s185 + $0x18] sm:$0xff]
        %v199 = vld [vmem:[%s185 + $0x20] sm:$0xff]
        %v200 = vld [vmem:[%s185 + $0x28] sm:$0xff]
        %v201 = vld [vmem:[%s185 + $0x30] sm:$0xff]
        %v202 = vld [vmem:[%s185 + $0x38] sm:$0xff]
        %v203 = vld [vmem:[%s185 + $0x40] sm:$0xff]
        %v204 = vld [vmem:[%s185 + $0x48] sm:$0xff]
        %v205 = vld [vmem:[%s185 + $0x50] sm:$0xff]
        %v206 = vld [vmem:[%s185 + $0x58] sm:$0xff]
        %v207 = vld [vmem:[%s185 + $0x60] sm:$0xff]
        %v208 = vld [vmem:[%s185 + $0x68] sm:$0xff]
        %v209 = vld [vmem:[%s185 + $0x70] sm:$0xff]
        %v210 = vld [vmem:[%s185 + $0x78] sm:$0xff]
        %v211 = vpack.c.bf16 %v196, %v195
        %v212 = vpack.c.bf16 %v198, %v197
        %v213 = vpack.c.bf16 %v200, %v199
        %v214 = vpack.c.bf16 %v202, %v201
        %v215 = vpack.c.bf16 %v204, %v203
        %v216 = vpack.c.bf16 %v206, %v205
        %v217 = vpack.c.bf16 %v208, %v207
        %v218 = vpack.c.bf16 %v210, %v209
        %v219 = vld [vmem:[%s1] sm:$0xff]
        %v220 = vld [vmem:[%s1 + $0x8] sm:$0xff]
        %v221 = vpack.c.bf16 %v220, %v219
        %vm222 = vcmask 130048
        %v224 = vsel %vm222, %v211, 0
        %v227 = vsel %vm222, %v212, 0
        %v230 = vsel %vm222, %v213, 0
        %v233 = vsel %vm222, %v214, 0
        %v236 = vsel %vm222, %v215, 0
        %v239 = vsel %vm222, %v216, 0
        %v242 = vsel %vm222, %v217, 0
        %v245 = vsel %vm222, %v218, 0
        %247 = vmatpush.bf16.msra.mxu0 0
        %248 = vmatpush.bf16.msra.mxu0 0
        %249 = vmatpush.bf16.msra.mxu0 0
        %250 = vmatpush.bf16.msra.mxu0 0
        %251 = vmatpush.bf16.msra.mxu0 0
        %252 = vmatpush.bf16.msra.mxu0 0
        %253 = vmatpush.bf16.msra.mxu0 0
        %254 = vmatpush.bf16.msra.mxu0 %v221
        %255 = vmatmul.bf16.gmra.mxu0 %v224
        %v256 = vpop.f32.mrf.mxu0
        %v257 = vadd.f32 0.0, %v256
        %v258 = vpop.f32.mrf.mxu0
        %v259 = vadd.f32 0.0, %v258
        %260 = vmatmul.bf16.gmra.mxu0 %v227
        %v261 = vpop.f32.mrf.mxu0
        %v262 = vadd.f32 0.0, %v261
        %v263 = vpop.f32.mrf.mxu0
        %v264 = vadd.f32 0.0, %v263
        %265 = vmatmul.bf16.gmra.mxu0 %v230
        %v266 = vpop.f32.mrf.mxu0
        %v267 = vadd.f32 0.0, %v266
        %v268 = vpop.f32.mrf.mxu0
        %v269 = vadd.f32 0.0, %v268
        %270 = vmatmul.bf16.gmra.mxu0 %v233
        %v271 = vpop.f32.mrf.mxu0
        %v272 = vadd.f32 0.0, %v271
        %v273 = vpop.f32.mrf.mxu0
        %v274 = vadd.f32 0.0, %v273
        %275 = vmatmul.bf16.gmra.mxu0 %v236
        %v276 = vpop.f32.mrf.mxu0
        %v277 = vadd.f32 0.0, %v276
        %v278 = vpop.f32.mrf.mxu0
        %v279 = vadd.f32 0.0, %v278
        %280 = vmatmul.bf16.gmra.mxu0 %v239
        %v281 = vpop.f32.mrf.mxu0
        %v282 = vadd.f32 0.0, %v281
        %v283 = vpop.f32.mrf.mxu0
        %v284 = vadd.f32 0.0, %v283
        %285 = vmatmul.bf16.gmra.mxu0 %v242
        %v286 = vpop.f32.mrf.mxu0
        %v287 = vadd.f32 0.0, %v286
        %v288 = vpop.f32.mrf.mxu0
        %v289 = vadd.f32 0.0, %v288
        %290 = vmatmul.bf16.gmra.mxu0 %v245
        %v291 = vpop.f32.mrf.mxu0
        %v292 = vadd.f32 0.0, %v291
        %v293 = vpop.f32.mrf.mxu0
        %v294 = vadd.f32 0.0, %v293
        %295 = vdwg.mxu0
        %v296 = vld [vmem:[%s191] sm:$0xff]
        %v297 = vld [vmem:[%s191 + $0x8] sm:$0xff]
        %v298 = vld [vmem:[%s191 + $0x10] sm:$0xff]
        %v299 = vld [vmem:[%s191 + $0x18] sm:$0xff]
        %v300 = vld [vmem:[%s191 + $0x20] sm:$0xff]
        %v301 = vld [vmem:[%s191 + $0x28] sm:$0xff]
        %v302 = vld [vmem:[%s191 + $0x30] sm:$0xff]
        %v303 = vld [vmem:[%s191 + $0x38] sm:$0xff]
        %v304 = vld [vmem:[%s191 + $0x40] sm:$0xff]
        %v305 = vld [vmem:[%s191 + $0x48] sm:$0xff]
        %v306 = vld [vmem:[%s191 + $0x50] sm:$0xff]
        %v307 = vld [vmem:[%s191 + $0x58] sm:$0xff]
        %v308 = vld [vmem:[%s191 + $0x60] sm:$0xff]
        %v309 = vld [vmem:[%s191 + $0x68] sm:$0xff]
        %v310 = vld [vmem:[%s191 + $0x70] sm:$0xff]
        %v311 = vld [vmem:[%s191 + $0x78] sm:$0xff]
        %313 = vset.pattern.permute.xlu0 0
        %314 = vperm.xlu0 %313, %v296
        %v315 = vpop.permute.xlu0 %314
        %318 = vset.pattern.permute.xlu0 0
        %319 = vperm.xlu0 %318, %v297
        %v320 = vpop.permute.xlu0 %319
        %323 = vset.pattern.permute.xlu0 0
        %324 = vperm.xlu0 %323, %v298
        %v325 = vpop.permute.xlu0 %324
        %328 = vset.pattern.permute.xlu0 0
        %329 = vperm.xlu0 %328, %v299
        %v330 = vpop.permute.xlu0 %329
        %333 = vset.pattern.permute.xlu0 0
        %334 = vperm.xlu0 %333, %v300
        %v335 = vpop.permute.xlu0 %334
        %338 = vset.pattern.permute.xlu0 0
        %339 = vperm.xlu0 %338, %v301
        %v340 = vpop.permute.xlu0 %339
        %343 = vset.pattern.permute.xlu0 0
        %344 = vperm.xlu0 %343, %v302
        %v345 = vpop.permute.xlu0 %344
        %348 = vset.pattern.permute.xlu0 0
        %349 = vperm.xlu0 %348, %v303
        %v350 = vpop.permute.xlu0 %349
        %353 = vset.pattern.permute.xlu0 0
        %354 = vperm.xlu0 %353, %v304
        %v355 = vpop.permute.xlu0 %354
        %358 = vset.pattern.permute.xlu0 0
        %359 = vperm.xlu0 %358, %v305
        %v360 = vpop.permute.xlu0 %359
        %363 = vset.pattern.permute.xlu0 0
        %364 = vperm.xlu0 %363, %v306
        %v365 = vpop.permute.xlu0 %364
        %368 = vset.pattern.permute.xlu0 0
        %369 = vperm.xlu0 %368, %v307
        %v370 = vpop.permute.xlu0 %369
        %373 = vset.pattern.permute.xlu0 0
        %374 = vperm.xlu0 %373, %v308
        %v375 = vpop.permute.xlu0 %374
        %378 = vset.pattern.permute.xlu0 0
        %379 = vperm.xlu0 %378, %v309
        %v380 = vpop.permute.xlu0 %379
        %383 = vset.pattern.permute.xlu0 0
        %384 = vperm.xlu0 %383, %v310
        %v385 = vpop.permute.xlu0 %384
        %388 = vset.pattern.permute.xlu0 0
        %389 = vperm.xlu0 %388, %v311
        %v390 = vpop.permute.xlu0 %389
        %v392 = vmul.f32 %v315, %v257
        %v393 = vmul.f32 %v320, %v259
        %v394 = vmul.f32 %v325, %v262
        %v395 = vmul.f32 %v330, %v264
        %v396 = vmul.f32 %v335, %v267
        %v397 = vmul.f32 %v340, %v269
        %v398 = vmul.f32 %v345, %v272
        %v399 = vmul.f32 %v350, %v274
        %v400 = vmul.f32 %v355, %v277
        %v401 = vmul.f32 %v360, %v279
        %v402 = vmul.f32 %v365, %v282
        %v403 = vmul.f32 %v370, %v284
        %v404 = vmul.f32 %v375, %v287
        %v405 = vmul.f32 %v380, %v289
        %v406 = vmul.f32 %v385, %v292
        %v407 = vmul.f32 %v390, %v294
        %v408 = vpack.c.bf16 %v392, %v392
        %v409 = vpack.c.bf16 %v393, %v393
        %v410 = vpack.c.bf16 %v394, %v394
        %v411 = vpack.c.bf16 %v395, %v395
        %v412 = vpack.c.bf16 %v396, %v396
        %v413 = vpack.c.bf16 %v397, %v397
        %v414 = vpack.c.bf16 %v398, %v398
        %v415 = vpack.c.bf16 %v399, %v399
        %v416 = vpack.c.bf16 %v400, %v400
        %v417 = vpack.c.bf16 %v401, %v401
        %v418 = vpack.c.bf16 %v402, %v402
        %v419 = vpack.c.bf16 %v403, %v403
        %v420 = vpack.c.bf16 %v404, %v404
        %v421 = vpack.c.bf16 %v405, %v405
        %v422 = vpack.c.bf16 %v406, %v406
        %v423 = vpack.c.bf16 %v407, %v407
        %424 = vst [vmem:[%s180] sm:$0xf] %v408
        %425 = vst [vmem:[%s180 + $0x4] sm:$0xf] %v409
        %426 = vst [vmem:[%s180 + $0x8] sm:$0xf] %v410
        %427 = vst [vmem:[%s180 + $0xc] sm:$0xf] %v411
        %428 = vst [vmem:[%s180 + $0x10] sm:$0xf] %v412
        %429 = vst [vmem:[%s180 + $0x14] sm:$0xf] %v413
        %430 = vst [vmem:[%s180 + $0x18] sm:$0xf] %v414
        %431 = vst [vmem:[%s180 + $0x1c] sm:$0xf] %v415
        %432 = vst [vmem:[%s180 + $0x20] sm:$0xf] %v416
        %433 = vst [vmem:[%s180 + $0x24] sm:$0xf] %v417
        %434 = vst [vmem:[%s180 + $0x28] sm:$0xf] %v418
        %435 = vst [vmem:[%s180 + $0x2c] sm:$0xf] %v419
        %436 = vst [vmem:[%s180 + $0x30] sm:$0xf] %v420
        %437 = vst [vmem:[%s180 + $0x34] sm:$0xf] %v421
        %438 = vst [vmem:[%s180 + $0x38] sm:$0xf] %v422
        %439 = vst [vmem:[%s180 + $0x3c] sm:$0xf] %v423
        %s440 = sand.u32 %s98, 1
        %s441 = scalar_lea.sflag [#allocation3], %s440
        %s442 = sand.u32 %s98, 1
        %s443 = smul.addr %s442, 64
        %s444 = scalar_lea.vmem [#allocation2], %s443
        // Predicated region
        $region33: #{tpu_custom_call.1} parent=31 // pred_check
          %p445 = pneg %p108
        $region34: #{tpu_custom_call.1} parent=31 // pred_check_branch
          %447 = sbr.rel (%p445) target = $region36
        $region35: #{tpu_custom_call.1} parent=31 // pred_region
          %s448 = smul.u32 16, %s17
          %450 = vsyncadd %s441, 0
          %s451 = smul.addr %s448, 4
          %s452 = scalar_lea.hbm %s3, %s451
          %s453 = sshll.u32 %s444, 4
          %s454 = int_to_ptr.vmem [resolvable:$true] %s453
          %s455 = sshll.u32 %s452, 4
          %s456 = int_to_ptr.hbm [resolvable:$true] %s455
          %461 = dma.vmem_to_hbm [thread:$0]  %s454, 1024, %s456, %s441, 64, 64, 4
        $region36: #{tpu_custom_call.1} parent=31 // pred_fallthru
          _
      $region32: #{tpu_custom_call.1} parent=5 // pred_fallthru
        _
      %p462 = scmp.le.s32.totalorder 2, %s12
      // Predicated region
      $region37: #{tpu_custom_call.1} parent=5 // pred_check
        %p463 = pneg %p462
      $region38: #{tpu_custom_call.1} parent=5 // pred_check_branch
        %465 = sbr.rel (%p463) target = $region40
      $region39: #{tpu_custom_call.1} parent=5 // pred_region
        %s466 = ssub.s32 %s12, 2
        // Predicated region
        $region41: #{tpu_custom_call.1} parent=39 // pred_check
          %p467 = pneg %p114
        $region42: #{tpu_custom_call.1} parent=39 // pred_check_branch
          %469 = sbr.rel (%p467) target = $region44
        $region43: #{tpu_custom_call.1} parent=39 // pred_region
          %s470 = sand.u32 %s99, 1
          %s471 = scalar_lea.sflag [#allocation3], %s470
          %s472 = sand.u32 %s99, 1
          %s473 = smul.addr %s472, 64
          %s474 = scalar_lea.vmem [#allocation2], %s473
          %476 = dma.done %s471, 1024
        $region44: #{tpu_custom_call.1} parent=39 // pred_fallthru
          _
      $region40: #{tpu_custom_call.1} parent=5 // pred_fallthru
        _
    $region6: #{tpu_custom_call.1} parent=1 // loop_footer
      %s16 = sadd.s32 1, %s12
    $region7: #{tpu_custom_call.1} parent=1 // loop_footer_branch
      %11 = sbr.rel target = $region3
    $region8: #{tpu_custom_call.1} parent=1 // loop_exit
      _
    %477 = vsyncpa [#allocation3], 1
    %s478 = scalar_lea.sflag [#allocation3], 1
    %479 = vsyncpa %s478, 1

</llo_original>
